<compile_context>
chip_gen: v7x
topology: tpu7x:2x2x1
jax: 0.10.0
libtpu: 0.0.40
codegen_flags: <defaults>
</compile_context>

<pallas_src>
import jax
import jax.numpy as jnp
from jax import lax
from jax.experimental import pallas as pl
from jax.experimental.pallas import tpu as pltpu

LN_EPS = 1e-5


def _round_up(x, m):
    return ((x + m - 1) // m) * m


def _patch_embed_kernel(x_ref, w_ref, b_ref, g_ref, beta_ref, o_ref):
    # x_ref:    (TM, K_pad)   bf16 im2col patch rows
    # w_ref:    (K_pad, c2)   bf16 projection weight (resident across grid)
    # b_ref/g_ref/beta_ref: (1, c2) f32
    # o_ref:    (TM, c2)      output rows (f32)
    y = jnp.dot(x_ref[...], w_ref[...],
                preferred_element_type=jnp.float32)            # MXU, f32 accumulate
    y = y + b_ref[...]                                         # conv bias
    # LayerNorm over c2 (biased variance, like torch.nn.LayerNorm), all in f32
    mean = jnp.mean(y, axis=-1, keepdims=True)
    var = jnp.mean(jnp.square(y - mean), axis=-1, keepdims=True)
    yn = (y - mean) * lax.rsqrt(var + LN_EPS)
    o_ref[...] = (yn * g_ref[...] + beta_ref[...]).astype(o_ref.dtype)


def patch_embed(x, weight, bias, gamma, beta, patch_size=7, stride=4,
                tm_target=512):
    """x: (B, C, H, W) NCHW. Returns ((B, H_out*W_out, c2), H_out, W_out)."""
    B, C, H, W = x.shape
    c2 = weight.shape[0]
    k = patch_size
    p = k // 2
    H_out = (H + 2 * p - k) // stride + 1
    W_out = (W + 2 * p - k) // stride + 1
    N = H_out * W_out
    K = C * k * k

    # --- im2col with K trailing (ordering: kh, kw, c1), no big transpose ---
    # Only the *raw* input is transposed to NHWC (cheap); the inflated im2col
    # tensor is assembled directly in (B, N, K) layout.
    x_nhwc = jnp.transpose(x, (0, 2, 3, 1))                     # (B, H, W, C)
    xp = jnp.pad(x_nhwc, ((0, 0), (p, p), (p, p), (0, 0)))
    views = []
    for ki in range(k):
        for kj in range(k):
            views.append(xp[:, ki:ki + stride * H_out:stride,
                               kj:kj + stride * W_out:stride, :])  # (B,Ho,Wo,C)
    cols = jnp.stack(views, axis=3)                             # (B,Ho,Wo,k*k,C)
    cols = cols.reshape(B, N, K)                                # metadata reshape

    # --- pad K to a multiple of 128 (clean MXU contraction) and N to TM ---
    K_pad = _round_up(K, 128)
    TM = min(tm_target, _round_up(N, 8))                        # rows per grid step
    N_pad = _round_up(N, TM)
    cols = jnp.pad(cols, ((0, 0), (0, N_pad - N), (0, K_pad - K)))
    cols = cols.astype(jnp.bfloat16)                            # halve HBM read bytes

    # PyTorch conv weight (c2, c1, kh, kw) -> (kh, kw, c1, c2) -> (K, c2),
    # matching the im2col K ordering; zero-pad K rows (result-preserving).
    w2 = jnp.transpose(weight, (2, 3, 1, 0)).reshape(K, c2)
    w2 = jnp.pad(w2, ((0, K_pad - K), (0, 0))).astype(jnp.bfloat16)
    b2 = bias.reshape(1, c2).astype(jnp.float32)
    g2 = gamma.reshape(1, c2).astype(jnp.float32)
    beta2 = beta.reshape(1, c2).astype(jnp.float32)

    grid = (B, N_pad // TM)
    out_itemsize = jnp.dtype(x.dtype).itemsize
    cost = pl.CostEstimate(
        flops=2 * B * N_pad * K_pad * c2,
        transcendentals=0,
        bytes_accessed=(B * N_pad * K_pad * 2            # bf16 patches
                        + K_pad * c2 * 2                 # bf16 weight
                        + B * N_pad * c2 * out_itemsize  # output
                        + 3 * c2 * 4),                   # bias/gamma/beta
    )

    out = pl.pallas_call(
        _patch_embed_kernel,
        out_shape=jax.ShapeDtypeStruct((B, N_pad, c2), x.dtype),
        grid_spec=pltpu.PrefetchScalarGridSpec(
            num_scalar_prefetch=0,
            grid=grid,
            in_specs=[
                # batch dim squeezed -> kernel sees (TM, K_pad)
                pl.BlockSpec((None, TM, K_pad), lambda b, m: (b, m, 0)),
                pl.BlockSpec((K_pad, c2), lambda b, m: (0, 0)),   # resident weight
                pl.BlockSpec((1, c2), lambda b, m: (0, 0)),       # conv bias
                pl.BlockSpec((1, c2), lambda b, m: (0, 0)),       # LN gamma
                pl.BlockSpec((1, c2), lambda b, m: (0, 0)),       # LN beta
            ],
            out_specs=pl.BlockSpec((None, TM, c2), lambda b, m: (b, m, 0)),
        ),
        compiler_params=pltpu.CompilerParams(
            dimension_semantics=("parallel", "parallel")),
        cost_estimate=cost,
    )(cols, w2, b2, g2, beta2)

    if N_pad != N:
        out = out[:, :N, :]
    return out, H_out, W_out


def _reference(x, weight, bias, gamma, beta, patch_size=7, stride=4):
    p = patch_size // 2
    B = x.shape[0]
    c2 = weight.shape[0]
    y = lax.conv_general_dilated(
        x, weight, (stride, stride), ((p, p), (p, p)),
        dimension_numbers=("NCHW", "OIHW", "NCHW"))
    y = y + bias.reshape(1, c2, 1, 1)
    H_out, W_out = y.shape[2], y.shape[3]
    y = y.reshape(B, c2, H_out * W_out).transpose(0, 2, 1)
    mean = y.mean(-1, keepdims=True)
    var = jnp.mean(jnp.square(y - mean), -1, keepdims=True)
    y = (y - mean) / jnp.sqrt(var + LN_EPS) * gamma + beta
    return y, H_out, W_out


if __name__ == "__main__":
    # Small shapes consistent with the module: c1=4, c2=32, patch_size=7, stride=4
    B, C, H, W = 2, 4, 16, 16
    c2, patch_size, stride = 32, 7, 4

    key = jax.random.PRNGKey(0)
    kx, kw, kb, kg, kbe = jax.random.split(key, 5)
    x = jax.random.normal(kx, (B, C, H, W), jnp.float32)
    weight = jax.random.normal(kw, (c2, C, patch_size, patch_size), jnp.float32) * 0.05
    bias = jax.random.normal(kb, (c2,), jnp.float32) * 0.1
    gamma = 1.0 + 0.1 * jax.random.normal(kg, (c2,), jnp.float32)
    beta = 0.1 * jax.random.normal(kbe, (c2,), jnp.float32)

    out, H_out, W_out = patch_embed(x, weight, bias, gamma, beta, patch_size, stride)
    out = jax.block_until_ready(out)

    ref, H_ref, W_ref = _reference(x, weight, bias, gamma, beta, patch_size, stride)
    assert (H_out, W_out) == (H_ref, W_ref), (H_out, W_out, H_ref, W_ref)
    assert out.shape == (B, H_out * W_out, c2), out.shape
    # Matmul operands are bf16 (accumulation in f32), so allow bf16-level tolerance.
    assert jnp.allclose(out, ref, atol=5e-2, rtol=5e-2), float(jnp.max(jnp.abs(out - ref)))

    print("KERNEL_OK")
</pallas_src>

<mosaic_0001>
module attributes {stable_mosaic.version = 11 : i64} {
  func.func @_patch_embed_kernel(%arg0: i32, %arg1: i32, %arg2: memref<1x16x256xbf16, #tpu.memory_space<vmem>>, %arg3: memref<256x32xbf16, #tpu.memory_space<vmem>>, %arg4: memref<1x32xf32, #tpu.memory_space<vmem>>, %arg5: memref<1x32xf32, #tpu.memory_space<vmem>>, %arg6: memref<1x32xf32, #tpu.memory_space<vmem>>, %arg7: memref<1x16x32xf32, #tpu.memory_space<vmem>>) attributes {dimension_semantics = [#tpu.dimension_semantics<parallel>, #tpu.dimension_semantics<parallel>], iteration_bounds = array<i64: 2, 1>, scalar_prefetch = 0 : i64, scratch_operands = 0 : i64, tpu.core_type = #tpu.core_type<tc>, window_params = [{transform_indices = @transform_0, window_bounds = array<i64: 1, 16, 256>}, {pipeline_mode = #tpu.pipeline_mode<synchronous>, transform_indices = @transform_1, window_bounds = array<i64: 256, 32>}, {pipeline_mode = #tpu.pipeline_mode<synchronous>, transform_indices = @transform_2, window_bounds = array<i64: 1, 32>}, {pipeline_mode = #tpu.pipeline_mode<synchronous>, transform_indices = @transform_3, window_bounds = array<i64: 1, 32>}, {pipeline_mode = #tpu.pipeline_mode<synchronous>, transform_indices = @transform_4, window_bounds = array<i64: 1, 32>}, {transform_indices = @transform_5, window_bounds = array<i64: 1, 16, 32>}]} {
    %c0 = arith.constant 0 : index
    %c0_0 = arith.constant 0 : index
    %c0_1 = arith.constant 0 : index
    %0 = vector.load %arg2[%c0, %c0_0, %c0_1] : memref<1x16x256xbf16, #tpu.memory_space<vmem>>, vector<1x16x256xbf16>
    %1 = vector.shape_cast %0 : vector<1x16x256xbf16> to vector<16x256xbf16>
    %c0_2 = arith.constant 0 : index
    %c0_3 = arith.constant 0 : index
    %2 = vector.load %arg3[%c0_2, %c0_3] : memref<256x32xbf16, #tpu.memory_space<vmem>>, vector<256x32xbf16>
    %cst = arith.constant dense<0.000000e+00> : vector<16x32xf32>
    %3 = tpu.matmul %1, %2, %cst {dimension_numbers = #tpu.dot_dimension_numbers<[1], [0], [0], [1], [0, 0, 1, 1], [], []>} : vector<16x256xbf16>, vector<256x32xbf16>, vector<16x32xf32> -> vector<16x32xf32>
    %c0_4 = arith.constant 0 : index
    %c0_5 = arith.constant 0 : index
    %4 = vector.load %arg4[%c0_4, %c0_5] : memref<1x32xf32, #tpu.memory_space<vmem>>, vector<1x32xf32>
    %5 = vector.broadcast %4 : vector<1x32xf32> to vector<16x32xf32>
    %6 = arith.addf %3, %5 : vector<16x32xf32>
    %cst_6 = arith.constant dense<0.000000e+00> : vector<16xf32>
    %7 = vector.multi_reduction <add>, %6, %cst_6 [1] : vector<16x32xf32> to vector<16xf32>
    %8 = vector.shape_cast %7 : vector<16xf32> to vector<16x1xf32>
    %cst_7 = arith.constant 3.200000e+01 : f32
    %9 = vector.broadcast %cst_7 : f32 to vector<16x1xf32>
    %10 = arith.divf %8, %9 : vector<16x1xf32>
    %11 = vector.broadcast %10 : vector<16x1xf32> to vector<16x32xf32>
    %12 = arith.subf %6, %11 : vector<16x32xf32>
    %13 = arith.mulf %12, %12 : vector<16x32xf32>
    %cst_8 = arith.constant dense<0.000000e+00> : vector<16xf32>
    %14 = vector.multi_reduction <add>, %13, %cst_8 [1] : vector<16x32xf32> to vector<16xf32>
    %15 = vector.shape_cast %14 : vector<16xf32> to vector<16x1xf32>
    %cst_9 = arith.constant 3.200000e+01 : f32
    %16 = vector.broadcast %cst_9 : f32 to vector<16x1xf32>
    %17 = arith.divf %15, %16 : vector<16x1xf32>
    %18 = vector.broadcast %10 : vector<16x1xf32> to vector<16x32xf32>
    %19 = arith.subf %6, %18 : vector<16x32xf32>
    %cst_10 = arith.constant 9.99999974E-6 : f32
    %20 = vector.broadcast %cst_10 : f32 to vector<16x1xf32>
    %21 = arith.addf %17, %20 : vector<16x1xf32>
    %22 = math.rsqrt %21 : vector<16x1xf32>
    %23 = vector.broadcast %22 : vector<16x1xf32> to vector<16x32xf32>
    %24 = arith.mulf %19, %23 : vector<16x32xf32>
    %c0_11 = arith.constant 0 : index
    %c0_12 = arith.constant 0 : index
    %25 = vector.load %arg5[%c0_11, %c0_12] : memref<1x32xf32, #tpu.memory_space<vmem>>, vector<1x32xf32>
    %26 = vector.broadcast %25 : vector<1x32xf32> to vector<16x32xf32>
    %27 = arith.mulf %24, %26 : vector<16x32xf32>
    %c0_13 = arith.constant 0 : index
    %c0_14 = arith.constant 0 : index
    %28 = vector.load %arg6[%c0_13, %c0_14] : memref<1x32xf32, #tpu.memory_space<vmem>>, vector<1x32xf32>
    %29 = vector.broadcast %28 : vector<1x32xf32> to vector<16x32xf32>
    %30 = arith.addf %27, %29 : vector<16x32xf32>
    %c0_15 = arith.constant 0 : index
    %c0_16 = arith.constant 0 : index
    %c0_17 = arith.constant 0 : index
    %31 = vector.load %arg7[%c0_15, %c0_16, %c0_17] : memref<1x16x32xf32, #tpu.memory_space<vmem>>, vector<1x16x32xf32>
    %32 = vector.shape_cast %31 : vector<1x16x32xf32> to vector<16x32xf32>
    %33 = vector.shape_cast %30 : vector<16x32xf32> to vector<1x16x32xf32>
    tpu.vector_store %arg7[%c0_15, %c0_16, %c0_17], %33 {strides = array<i32>} : memref<1x16x32xf32, #tpu.memory_space<vmem>>, vector<1x16x32xf32>,
    return
  }
  func.func @transform_0(%arg0: i32, %arg1: i32) -> (i32, i32, i32) {
    %c0_i32 = arith.constant 0 : i32
    %c0_i32_0 = arith.constant 0 : i32
    return %arg0, %arg1, %c0_i32 : i32, i32, i32
  }
  func.func @transform_1(%arg0: i32, %arg1: i32) -> (i32, i32) {
    %c0_i32 = arith.constant 0 : i32
    %c0_i32_0 = arith.constant 0 : i32
    %c0_i32_1 = arith.constant 0 : i32
    return %c0_i32, %c0_i32_0 : i32, i32
  }
  func.func @transform_2(%arg0: i32, %arg1: i32) -> (i32, i32) {
    %c0_i32 = arith.constant 0 : i32
    %c0_i32_0 = arith.constant 0 : i32
    %c0_i32_1 = arith.constant 0 : i32
    return %c0_i32, %c0_i32_0 : i32, i32
  }
  func.func @transform_3(%arg0: i32, %arg1: i32) -> (i32, i32) {
    %c0_i32 = arith.constant 0 : i32
    %c0_i32_0 = arith.constant 0 : i32
    %c0_i32_1 = arith.constant 0 : i32
    return %c0_i32, %c0_i32_0 : i32, i32
  }
  func.func @transform_4(%arg0: i32, %arg1: i32) -> (i32, i32) {
    %c0_i32 = arith.constant 0 : i32
    %c0_i32_0 = arith.constant 0 : i32
    %c0_i32_1 = arith.constant 0 : i32
    return %c0_i32, %c0_i32_0 : i32, i32
  }
  func.func @transform_5(%arg0: i32, %arg1: i32) -> (i32, i32, i32) {
    %c0_i32 = arith.constant 0 : i32
    %c0_i32_0 = arith.constant 0 : i32
    return %arg0, %arg1, %c0_i32 : i32, i32, i32
  }
}

</mosaic_0001>

<llo_original>
// kernel: tpu_custom_call.1
$region0: #{tpu_custom_call.1}
  #allocation0 [shape = 'u32[]', space=smem, size = 0x4, offset = 0x4, fixed_abs, tag = 'smem constant byte address 0x4 - core index']
  #allocation1 [shape = 'u32[144,128]{1,0:T(1,128)}', space=vmem, size = 0x12000, scoped, tag = 'internal scratch']
  %s0 = inlined_call_operand.vmem [shape: bf16[2,16,256], index: 0, kind: input, shape index: {}]
  %s1 = inlined_call_operand.vmem [shape: bf16[256,32], index: 1, kind: input, shape index: {}]
  %s2 = inlined_call_operand.vmem [shape: f32[1,32], index: 2, kind: input, shape index: {}]
  %s3 = inlined_call_operand.vmem [shape: f32[1,32], index: 3, kind: input, shape index: {}]
  %s4 = inlined_call_operand.vmem [shape: f32[1,32], index: 4, kind: input, shape index: {}]
  %s5 = inlined_call_operand.hbm [shape: f32[2,16,32], index: 5, kind: output, shape index: {}]
  %s6 = sld [smem:[#allocation0]]
  $region53: #{tpu_custom_call.1} parent=0
    _
  %s8 = ssub.s32 1, %s6
  %s9 = scalar_select 0, %s8, %s6
  $region1: #{tpu_custom_call.1} parent=0
    #allocation2 [shape = 'u8[16384]{0}', space=vmem, size = 0x4000, scoped, tag = 'output window, operand 0']
    #allocation3 [shape = 's32[2]{0}', space=sflag, size = 0x8, scoped, tag = 'scoped memory for tpu_custom_call.1']
    %10 = vsyncpa [#allocation3], 0
    %s11 = scalar_lea.sflag [#allocation3], 1
    %12 = vsyncpa %s11, 0
    loop: start=0, step=1, limit=4
    $region2: #{tpu_custom_call.1} parent=1 // loop_pre_header
      _
    $region3: #{tpu_custom_call.1} parent=1 // loop_header
      %s14 = sphi 0, %s18
      %p15 = scmp.ge.s32.totalorder %s14, 4
      %s21 = sphi 0, %s33
      %s22 = sphi 0, %s29
      %s23 = sphi 0, %s21
      %s24 = sphi 0, %s22
      %s25 = sphi 0, %s23
      %s26 = sphi 0, %s24
      %s38 = sphi 0, %s40
      %s41 = sphi 0, %s38
      %s42 = sphi 0, %s41
      %s58 = sphi 0, %s42
      %s62 = sphi 0, %s62
      %s64 = sphi 0, %s62
      %s65 = sphi 0, %s64
      %s79 = sphi 0, %s65
      %s83 = sphi 0, %s83
      %s85 = sphi 0, %s83
      %s86 = sphi 0, %s85
      %s100 = sphi 0, %s86
      %s104 = sphi 0, %s104
      %s106 = sphi 0, %s104
      %s107 = sphi 0, %s106
      %s121 = sphi 0, %s107
      %s125 = sphi 0, %s125
      %s127 = sphi 0, %s125
      %s128 = sphi 0, %s127
      %s142 = sphi 0, %s128
      %s150 = sphi 0, %s152
      %s153 = sphi 0, %s150
      %s154 = sphi 0, %s153
      %s170 = sphi 0, %s154
    $region4: #{tpu_custom_call.1} parent=1 // loop_header_branch
      %17 = sbr.rel (%p15) target = $region8
    $region5: #{tpu_custom_call.1} parent=1 // loop_body
      %s19 = ssub.s32 %s14, 1
      %s20 = ssub.s32 %s14, 2
      %s27 = sadd.s32 1, %s22
      %p28 = scmp.ge.s32.totalorder %s27, 1
      %s29 = scalar_select %p28, 0, %s27
      %s30 = sadd.s32 1, %s21
      %s31 = scalar_select %p28, %s30, %s21
      %p32 = scmp.ge.s32.totalorder %s31, 2
      %s33 = scalar_select %p32, 0, %s31
      %s34 = ssub.s32 %s21, %s33
      %s35 = ssub.s32 %s22, %s29
      %s36 = sor.u32 %s34, %s35
      %p37 = scmp.eq.s32.totalorder %s36, 0
      %s39 = sadd.s32 %s38, 1
      %s40 = scalar_select %p37, %s38, %s39
      %p43 = pneg %p37
      %p44 = scmp.eq.s32.totalorder %s14, 1
      %p45 = por %p43, %p44
      %p46 = scmp.ne.s32.totalorder %s38, %s41
      %p47 = scmp.eq.s32.totalorder %s14, 0
      %p48 = por %p46, %p47
      %p49 = scmp.ne.s32.totalorder %s38, %s41
      %p50 = scmp.eq.s32.totalorder %s19, 1
      %p51 = por %p49, %p50
      %p52 = scmp.ne.s32.totalorder %s41, %s42
      %p53 = scmp.eq.s32.totalorder %s19, 0
      %p54 = por %p52, %p53
      %p55 = scmp.ne.s32.totalorder %s41, %s42
      %p56 = scmp.eq.s32.totalorder %s20, 1
      %p57 = por %p55, %p56
      %p59 = scmp.ne.s32.totalorder %s42, %s58
      %p60 = scmp.eq.s32.totalorder %s20, 0
      %p61 = por %p59, %p60
      %s63 = sadd.s32 %s62, 1
      %p66 = scmp.eq.s32.totalorder %s14, 1
      %p67 = scmp.ne.s32.totalorder %s62, %s64
      %p68 = scmp.eq.s32.totalorder %s14, 0
      %p69 = por %p67, %p68
      %p70 = scmp.ne.s32.totalorder %s62, %s64
      %p71 = scmp.eq.s32.totalorder %s19, 1
      %p72 = por %p70, %p71
      %p73 = scmp.ne.s32.totalorder %s64, %s65
      %p74 = scmp.eq.s32.totalorder %s19, 0
      %p75 = por %p73, %p74
      %p76 = scmp.ne.s32.totalorder %s64, %s65
      %p77 = scmp.eq.s32.totalorder %s20, 1
      %p78 = por %p76, %p77
      %p80 = scmp.ne.s32.totalorder %s65, %s79
      %p81 = scmp.eq.s32.totalorder %s20, 0
      %p82 = por %p80, %p81
      %s84 = sadd.s32 %s83, 1
      %p87 = scmp.eq.s32.totalorder %s14, 1
      %p88 = scmp.ne.s32.totalorder %s83, %s85
      %p89 = scmp.eq.s32.totalorder %s14, 0
      %p90 = por %p88, %p89
      %p91 = scmp.ne.s32.totalorder %s83, %s85
      %p92 = scmp.eq.s32.totalorder %s19, 1
      %p93 = por %p91, %p92
      %p94 = scmp.ne.s32.totalorder %s85, %s86
      %p95 = scmp.eq.s32.totalorder %s19, 0
      %p96 = por %p94, %p95
      %p97 = scmp.ne.s32.totalorder %s85, %s86
      %p98 = scmp.eq.s32.totalorder %s20, 1
      %p99 = por %p97, %p98
      %p101 = scmp.ne.s32.totalorder %s86, %s100
      %p102 = scmp.eq.s32.totalorder %s20, 0
      %p103 = por %p101, %p102
      %s105 = sadd.s32 %s104, 1
      %p108 = scmp.eq.s32.totalorder %s14, 1
      %p109 = scmp.ne.s32.totalorder %s104, %s106
      %p110 = scmp.eq.s32.totalorder %s14, 0
      %p111 = por %p109, %p110
      %p112 = scmp.ne.s32.totalorder %s104, %s106
      %p113 = scmp.eq.s32.totalorder %s19, 1
      %p114 = por %p112, %p113
      %p115 = scmp.ne.s32.totalorder %s106, %s107
      %p116 = scmp.eq.s32.totalorder %s19, 0
      %p117 = por %p115, %p116
      %p118 = scmp.ne.s32.totalorder %s106, %s107
      %p119 = scmp.eq.s32.totalorder %s20, 1
      %p120 = por %p118, %p119
      %p122 = scmp.ne.s32.totalorder %s107, %s121
      %p123 = scmp.eq.s32.totalorder %s20, 0
      %p124 = por %p122, %p123
      %s126 = sadd.s32 %s125, 1
      %p129 = scmp.eq.s32.totalorder %s14, 1
      %p130 = scmp.ne.s32.totalorder %s125, %s127
      %p131 = scmp.eq.s32.totalorder %s14, 0
      %p132 = por %p130, %p131
      %p133 = scmp.ne.s32.totalorder %s125, %s127
      %p134 = scmp.eq.s32.totalorder %s19, 1
      %p135 = por %p133, %p134
      %p136 = scmp.ne.s32.totalorder %s127, %s128
      %p137 = scmp.eq.s32.totalorder %s19, 0
      %p138 = por %p136, %p137
      %p139 = scmp.ne.s32.totalorder %s127, %s128
      %p140 = scmp.eq.s32.totalorder %s20, 1
      %p141 = por %p139, %p140
      %p143 = scmp.ne.s32.totalorder %s128, %s142
      %p144 = scmp.eq.s32.totalorder %s20, 0
      %p145 = por %p143, %p144
      %s146 = ssub.s32 %s21, %s33
      %s147 = ssub.s32 %s22, %s29
      %s148 = sor.u32 %s146, %s147
      %p149 = scmp.eq.s32.totalorder %s148, 0
      %s151 = sadd.s32 %s150, 1
      %s152 = scalar_select %p149, %s150, %s151
      %p155 = pneg %p149
      %p156 = scmp.eq.s32.totalorder %s14, 1
      %p157 = por %p155, %p156
      %p158 = scmp.ne.s32.totalorder %s150, %s153
      %p159 = scmp.eq.s32.totalorder %s14, 0
      %p160 = por %p158, %p159
      %p161 = scmp.ne.s32.totalorder %s150, %s153
      %p162 = scmp.eq.s32.totalorder %s19, 1
      %p163 = por %p161, %p162
      %p164 = scmp.ne.s32.totalorder %s153, %s154
      %p165 = scmp.eq.s32.totalorder %s19, 0
      %p166 = por %p164, %p165
      %p167 = scmp.ne.s32.totalorder %s153, %s154
      %p168 = scmp.eq.s32.totalorder %s20, 1
      %p169 = por %p167, %p168
      %p171 = scmp.ne.s32.totalorder %s154, %s170
      %p172 = scmp.eq.s32.totalorder %s20, 0
      %p173 = por %p171, %p172
      %p174 = scmp.le.s32.totalorder 1, %s14
      %p175 = scmp.lt.s32.totalorder %s14, 3
      %p176 = pnand %p174, %p175
      %p177 = pneg %p176
      // Predicated region
      $region9: #{tpu_custom_call.1} parent=5 // pred_check
        _
      $region10: #{tpu_custom_call.1} parent=5 // pred_check_branch
        %179 = sbr.rel (%p176) target = $region12
      $region11: #{tpu_custom_call.1} parent=5 // pred_region
        %s180 = ssub.s32 %s14, 1
        // Predicated region
        $region13: #{tpu_custom_call.1} parent=11 // pred_check
          %p181 = pneg %p75
        $region14: #{tpu_custom_call.1} parent=11 // pred_check_branch
          %183 = sbr.rel (%p181) target = $region16
        $region15: #{tpu_custom_call.1} parent=11 // pred_region
          _
        $region16: #{tpu_custom_call.1} parent=11 // pred_fallthru
          _
        // Predicated region
        $region17: #{tpu_custom_call.1} parent=11 // pred_check
          %p184 = pneg %p96
        $region18: #{tpu_custom_call.1} parent=11 // pred_check_branch
          %186 = sbr.rel (%p184) target = $region20
        $region19: #{tpu_custom_call.1} parent=11 // pred_region
          _
        $region20: #{tpu_custom_call.1} parent=11 // pred_fallthru
          _
        // Predicated region
        $region21: #{tpu_custom_call.1} parent=11 // pred_check
          %p187 = pneg %p117
        $region22: #{tpu_custom_call.1} parent=11 // pred_check_branch
          %189 = sbr.rel (%p187) target = $region24
        $region23: #{tpu_custom_call.1} parent=11 // pred_region
          _
        $region24: #{tpu_custom_call.1} parent=11 // pred_fallthru
          _
        // Predicated region
        $region25: #{tpu_custom_call.1} parent=11 // pred_check
          %p190 = pneg %p138
        $region26: #{tpu_custom_call.1} parent=11 // pred_check_branch
          %192 = sbr.rel (%p190) target = $region28
        $region27: #{tpu_custom_call.1} parent=11 // pred_region
          _
        $region28: #{tpu_custom_call.1} parent=11 // pred_fallthru
          _
      $region12: #{tpu_custom_call.1} parent=5 // pred_fallthru
        _
      %p193 = scmp.lt.s32.totalorder %s14, 2
      // Predicated region
      $region29: #{tpu_custom_call.1} parent=5 // pred_check
        %p194 = pneg %p193
      $region30: #{tpu_custom_call.1} parent=5 // pred_check_branch
        %196 = sbr.rel (%p194) target = $region32
      $region31: #{tpu_custom_call.1} parent=5 // pred_region
        // Predicated region
        $region33: #{tpu_custom_call.1} parent=31 // pred_check
          %p197 = pneg %p48
        $region34: #{tpu_custom_call.1} parent=31 // pred_check_branch
          %199 = sbr.rel (%p197) target = $region36
        $region35: #{tpu_custom_call.1} parent=31 // pred_region
          %s200 = smul.u32 2, %s22
          %p201 = scmp.lt.s32.totalorder %s21, 1
          %s202 = scalar_select %p201, %s21, 1
          %p203 = scmp.lt.s32.totalorder %s200, 1
          %s204 = scalar_select %p203, %s200, 1
          %s205 = smul.addr %s204, 2
          %s206 = smul.addr %s202, 4
          %s207 = sadd.s32 %s205, %s206
          %s208 = smul.addr %s207, 4
          %s209 = scalar_lea.vmem %s0, %s208
          %s210 = smul.u32 2, %s22
        $region36: #{tpu_custom_call.1} parent=31 // pred_fallthru
          _
      $region32: #{tpu_custom_call.1} parent=5 // pred_fallthru
        _
      %p211 = scmp.le.s32.totalorder 1, %s14
      %p212 = scmp.lt.s32.totalorder %s14, 3
      %p213 = pnand %p211, %p212
      %p214 = pneg %p213
      // Predicated region
      $region37: #{tpu_custom_call.1} parent=5 // pred_check
        _
      $region38: #{tpu_custom_call.1} parent=5 // pred_check_branch
        %216 = sbr.rel (%p213) target = $region40
      $region39: #{tpu_custom_call.1} parent=5 // pred_region
        %s217 = ssub.s32 %s14, 1
        %s218 = smul.u32 2, %s24
        %p219 = scmp.lt.s32.totalorder %s23, 1
        %s220 = scalar_select %p219, %s23, 1
        %p221 = scmp.lt.s32.totalorder %s218, 1
        %s222 = scalar_select %p221, %s218, 1
        %s223 = smul.addr %s222, 2
        %s224 = smul.addr %s220, 4
        %s225 = sadd.s32 %s223, %s224
        %s226 = smul.addr %s225, 4
        %s227 = scalar_lea.vmem %s0, %s226
        %p228 = pneg %p54
        %p229 = pneg %p51
        %p230 = pneg %p75
        %p231 = pneg %p72
        %p232 = pneg %p96
        %p233 = pneg %p93
        %p234 = pneg %p117
        %p235 = pneg %p114
        %p236 = pneg %p138
        %p237 = pneg %p135
        %p238 = pneg %p166
        %p239 = pneg %p163
        %s240 = sand.u32 %s153, 1
        %s241 = scalar_lea.sflag [#allocation3], %s240
        %s242 = sand.u32 %s153, 1
        %s243 = smul.addr %s242, 16
        %s244 = scalar_lea.vmem [#allocation2], %s243
        %s245 = smul.u32 2, %s24
        %p246 = scmp.lt.s32.totalorder %s23, 1
        %s247 = scalar_select %p246, %s23, 1
        %p248 = scmp.lt.s32.totalorder %s245, 1
        %s249 = scalar_select %p248, %s245, 1
        %s250 = smul.addr %s249, 2
        %s251 = smul.addr %s247, 4
        %s252 = sadd.s32 %s250, %s251
        %s253 = smul.addr %s252, 4
        %s254 = scalar_lea.vmem %s0, %s253
        %s255 = smul.u32 2, %s24
        %s256 = smul.u32 2, %s24
        %v258 = vld [vmem:[%s254] sm:$0xff]
        %v259 = vld [vmem:[%s254 + $0x8] sm:$0xff]
        %v260 = vld [vmem:[%s1] sm:$0xf]
        %v261 = vld [vmem:[%s1 + $0x4] sm:$0xf]
        %v262 = vld [vmem:[%s1 + $0x8] sm:$0xf]
        %v263 = vld [vmem:[%s1 + $0xc] sm:$0xf]
        %v264 = vld [vmem:[%s1 + $0x10] sm:$0xf]
        %v265 = vld [vmem:[%s1 + $0x14] sm:$0xf]
        %v266 = vld [vmem:[%s1 + $0x18] sm:$0xf]
        %v267 = vld [vmem:[%s1 + $0x1c] sm:$0xf]
        %v268 = vld [vmem:[%s1 + $0x20] sm:$0xf]
        %v269 = vld [vmem:[%s1 + $0x24] sm:$0xf]
        %v270 = vld [vmem:[%s1 + $0x28] sm:$0xf]
        %v271 = vld [vmem:[%s1 + $0x2c] sm:$0xf]
        %v272 = vld [vmem:[%s1 + $0x30] sm:$0xf]
        %v273 = vld [vmem:[%s1 + $0x34] sm:$0xf]
        %v274 = vld [vmem:[%s1 + $0x38] sm:$0xf]
        %v275 = vld [vmem:[%s1 + $0x3c] sm:$0xf]
        %v276 = vld [vmem:[%s1 + $0x40] sm:$0xf]
        %v277 = vld [vmem:[%s1 + $0x44] sm:$0xf]
        %v278 = vld [vmem:[%s1 + $0x48] sm:$0xf]
        %v279 = vld [vmem:[%s1 + $0x4c] sm:$0xf]
        %v280 = vld [vmem:[%s1 + $0x50] sm:$0xf]
        %v281 = vld [vmem:[%s1 + $0x54] sm:$0xf]
        %v282 = vld [vmem:[%s1 + $0x58] sm:$0xf]
        %v283 = vld [vmem:[%s1 + $0x5c] sm:$0xf]
        %v284 = vld [vmem:[%s1 + $0x60] sm:$0xf]
        %v285 = vld [vmem:[%s1 + $0x64] sm:$0xf]
        %v286 = vld [vmem:[%s1 + $0x68] sm:$0xf]
        %v287 = vld [vmem:[%s1 + $0x6c] sm:$0xf]
        %v288 = vld [vmem:[%s1 + $0x70] sm:$0xf]
        %v289 = vld [vmem:[%s1 + $0x74] sm:$0xf]
        %v290 = vld [vmem:[%s1 + $0x78] sm:$0xf]
        %v291 = vld [vmem:[%s1 + $0x7c] sm:$0xf]
        %v292 = vld [vmem:[%s2] sm:$0x1]
        %v294 = vlaneseq
        %v295 = vshrl.u32 %v294, 7
        %v296 = vsub.s32 0, %v295
        %v297 = vrot.slane %v292, %v296
        %v301 = vunpack.c.l.b16 %v258
        %v302 = vunpack.c.h.b16 %v258
        %v303 = vunpack.c.l.b16 %v259
        %v304 = vunpack.c.h.b16 %v259
        %v305 = vpack.c.b16 %v303, %v301
        %v306 = vpack.c.b16 %v304, %v302
        %v341 = vunpack.c.l.b16 %v260
        %v342 = vunpack.c.l.b16 %v261
        %v343 = vunpack.c.l.b16 %v262
        %v344 = vunpack.c.l.b16 %v263
        %v345 = vunpack.c.l.b16 %v264
        %v346 = vunpack.c.l.b16 %v265
        %v347 = vunpack.c.l.b16 %v266
        %v348 = vunpack.c.l.b16 %v267
        %v349 = vunpack.c.l.b16 %v268
        %v350 = vunpack.c.l.b16 %v269
        %v351 = vunpack.c.l.b16 %v270
        %v352 = vunpack.c.l.b16 %v271
        %v353 = vunpack.c.l.b16 %v272
        %v354 = vunpack.c.l.b16 %v273
        %v355 = vunpack.c.l.b16 %v274
        %v356 = vunpack.c.l.b16 %v275
        %v357 = vunpack.c.l.b16 %v276
        %v358 = vunpack.c.l.b16 %v277
        %v359 = vunpack.c.l.b16 %v278
        %v360 = vunpack.c.l.b16 %v279
        %v361 = vunpack.c.l.b16 %v280
        %v362 = vunpack.c.l.b16 %v281
        %v363 = vunpack.c.l.b16 %v282
        %v364 = vunpack.c.l.b16 %v283
        %v365 = vunpack.c.l.b16 %v284
        %v366 = vunpack.c.l.b16 %v285
        %v367 = vunpack.c.l.b16 %v286
        %v368 = vunpack.c.l.b16 %v287
        %v369 = vunpack.c.l.b16 %v288
        %v370 = vunpack.c.l.b16 %v289
        %v371 = vunpack.c.l.b16 %v290
        %v372 = vunpack.c.l.b16 %v291
        %v373 = vpack.c.b16 %v342, %v341
        %v374 = vpack.c.b16 %v344, %v343
        %v375 = vpack.c.b16 %v346, %v345
        %v376 = vpack.c.b16 %v348, %v347
        %v377 = vpack.c.b16 %v350, %v349
        %v378 = vpack.c.b16 %v352, %v351
        %v379 = vpack.c.b16 %v354, %v353
        %v380 = vpack.c.b16 %v356, %v355
        %v381 = vpack.c.b16 %v358, %v357
        %v382 = vpack.c.b16 %v360, %v359
        %v383 = vpack.c.b16 %v362, %v361
        %v384 = vpack.c.b16 %v364, %v363
        %v385 = vpack.c.b16 %v366, %v365
        %v386 = vpack.c.b16 %v368, %v367
        %v387 = vpack.c.b16 %v370, %v369
        %v388 = vpack.c.b16 %v372, %v371
        %405 = vmatprep.subr.bf16.mxu0 0
        %406 = vmatpush1.bf16.msra.mxu0 %v373
        %407 = vmatprep.subr.bf16.mxu0 0
        %408 = vmatpush1.bf16.msra.mxu0 %v374
        %409 = vmatprep.subr.bf16.mxu0 0
        %410 = vmatpush1.bf16.msra.mxu0 %v375
        %411 = vmatprep.subr.bf16.mxu0 0
        %412 = vmatpush1.bf16.msra.mxu0 %v376
        %413 = vmatprep.subr.bf16.mxu0 0
        %414 = vmatpush1.bf16.msra.mxu0 %v377
        %415 = vmatprep.subr.bf16.mxu0 0
        %416 = vmatpush1.bf16.msra.mxu0 %v378
        %417 = vmatprep.subr.bf16.mxu0 0
        %418 = vmatpush1.bf16.msra.mxu0 %v379
        %419 = vmatprep.subr.bf16.mxu0 0
        %420 = vmatpush1.bf16.msra.mxu0 %v380
        %421 = vmatprep.subr.bf16.mxu0 0
        %422 = vmatpush1.bf16.msra.mxu0 %v381
        %423 = vmatprep.subr.bf16.mxu0 0
        %424 = vmatpush1.bf16.msra.mxu0 %v382
        %425 = vmatprep.subr.bf16.mxu0 0
        %426 = vmatpush1.bf16.msra.mxu0 %v383
        %427 = vmatprep.subr.bf16.mxu0 0
        %428 = vmatpush1.bf16.msra.mxu0 %v384
        %429 = vmatprep.subr.bf16.mxu0 0
        %430 = vmatpush1.bf16.msra.mxu0 %v385
        %431 = vmatprep.subr.bf16.mxu0 0
        %432 = vmatpush1.bf16.msra.mxu0 %v386
        %433 = vmatprep.subr.bf16.mxu0 0
        %434 = vmatpush1.bf16.msra.mxu0 %v387
        %435 = vmatprep.subr.bf16.mxu0 0
        %436 = vmatpush1.bf16.msra.mxu0 %v388
        %437 = vmatprep.mubr.bf16.mxu0 %v306
        %438 = vmatmul.mubr.bf16.gmra.mrb[0].mxu0 %v305
        %v439 = vpop.f32.mrb[0].mxu0
        %v440 = vadd.f32 %v297, %v439
        %v441 = vpop.f32.mrb[0].mxu0
        %v442 = vpop.f32.mrb[0].mxu0
        %v443 = vadd.f32 %v297, %v442
        %v444 = vpop.f32.mrb[0].mxu0
        %445 = vdwg.mxu0
        %vm446 = vcmask 261120
        %v447 = vsel %vm446, %v440, 0.0
        %448 = vadd.xlane.f32.xlu0 %v447
        %v449 = vpop.xlane.xlu0 %448
        %v450 = vsel %vm446, %v443, 0.0
        %451 = vadd.xlane.f32.xlu0 %v450
        %v452 = vpop.xlane.xlu0 %451
        %v453 = vrcp.pop 32.0
        %v454 = vmul.f32 %v449, %v453
        %v455 = vmul.f32 %v452, %v453
        %v456 = vsub.f32 %v440, %v454
        %v457 = vsub.f32 %v443, %v455
        %v458 = vmul.f32 %v456, %v456
        %v459 = vmul.f32 %v457, %v457
        %v460 = vsel %vm446, %v458, 0.0
        %461 = vadd.xlane.f32.xlu0 %v460
        %v462 = vpop.xlane.xlu0 %461
        %v463 = vsel %vm446, %v459, 0.0
        %464 = vadd.xlane.f32.xlu0 %v463
        %v465 = vpop.xlane.xlu0 %464
        %v466 = vmul.f32 %v462, %v453
        %v467 = vmul.f32 %v465, %v453
        %v468 = vadd.f32 %v466, 1e-05
        %v469 = vadd.f32 %v467, 1e-05
        %v470 = vrsqrt.pop %v468
        %v471 = vrsqrt.pop %v469
        %v472 = vmul.f32 %v456, %v470
        %v473 = vmul.f32 %v457, %v471
        %v474 = vld [vmem:[%s3] sm:$0x1]
        %v476 = vlaneseq
        %v477 = vshrl.u32 %v476, 7
        %v478 = vsub.s32 0, %v477
        %v479 = vrot.slane %v474, %v478
        %v481 = vmul.f32 %v472, %v479
        %v482 = vmul.f32 %v473, %v479
        %v483 = vld [vmem:[%s4] sm:$0x1]
        %v485 = vlaneseq
        %v486 = vshrl.u32 %v485, 7
        %v487 = vsub.s32 0, %v486
        %v488 = vrot.slane %v483, %v487
        %v490 = vadd.f32 %v481, %v488
        %v491 = vadd.f32 %v482, %v488
        %492 = vst.msk [vmem:[%s244] sm:$0xff] %vm446, %v490
        %493 = vst.msk [vmem:[%s244 + $0x8] sm:$0xff] %vm446, %v491
        %s494 = sand.u32 %s153, 1
        %s495 = scalar_lea.sflag [#allocation3], %s494
        %s496 = sand.u32 %s153, 1
        %s497 = smul.addr %s496, 16
        %s498 = scalar_lea.vmem [#allocation2], %s497
        // Predicated region
        $region41: #{tpu_custom_call.1} parent=39 // pred_check
          %p499 = pneg %p163
        $region42: #{tpu_custom_call.1} parent=39 // pred_check_branch
          %501 = sbr.rel (%p499) target = $region44
        $region43: #{tpu_custom_call.1} parent=39 // pred_region
          %s502 = smul.u32 2, %s24
          %s504 = ssub.s32 256, 256
          %505 = vsyncadd %s495, %s504
          %s506 = smul.addr %s23, 2
          %s507 = sadd.s32 %s502, %s506
          %s508 = smul.addr %s507, 128
          %s509 = scalar_lea.hbm %s5, %s508
          %s510 = sshll.u32 %s498, 4
          %s511 = int_to_ptr.vmem [resolvable:$true] %s510
          %516 = dma.vmem_to_hbm [thread:$0]  %s511, 256, %s509, %s495, 128, 128, 8
        $region44: #{tpu_custom_call.1} parent=39 // pred_fallthru
          _
      $region40: #{tpu_custom_call.1} parent=5 // pred_fallthru
        _
      %p517 = scmp.le.s32.totalorder 2, %s14
      // Predicated region
      $region45: #{tpu_custom_call.1} parent=5 // pred_check
        %p518 = pneg %p517
      $region46: #{tpu_custom_call.1} parent=5 // pred_check_branch
        %520 = sbr.rel (%p518) target = $region48
      $region47: #{tpu_custom_call.1} parent=5 // pred_region
        %s521 = ssub.s32 %s14, 2
        // Predicated region
        $region49: #{tpu_custom_call.1} parent=47 // pred_check
          %p522 = pneg %p169
        $region50: #{tpu_custom_call.1} parent=47 // pred_check_branch
          %524 = sbr.rel (%p522) target = $region52
        $region51: #{tpu_custom_call.1} parent=47 // pred_region
          %s525 = sand.u32 %s154, 1
          %s526 = scalar_lea.sflag [#allocation3], %s525
          %s527 = sand.u32 %s154, 1
          %s528 = smul.addr %s527, 16
          %s529 = scalar_lea.vmem [#allocation2], %s528
          %530 = dma.done %s526, 256
        $region52: #{tpu_custom_call.1} parent=47 // pred_fallthru
          _
      $region48: #{tpu_custom_call.1} parent=5 // pred_fallthru
        _
    $region6: #{tpu_custom_call.1} parent=1 // loop_footer
      %s18 = sadd.s32 1, %s14
    $region7: #{tpu_custom_call.1} parent=1 // loop_footer_branch
      %13 = sbr.rel target = $region3
    $region8: #{tpu_custom_call.1} parent=1 // loop_exit
      _
    %531 = vsyncpa [#allocation3], 1
    %s532 = scalar_lea.sflag [#allocation3], 1
    %533 = vsyncpa %s532, 1

</llo_original>
